<compile_context>
chip_gen: v6e
topology: v6e:2x2x1
jax: 0.10.0
libtpu: 0.0.40
codegen_flags: <defaults>
</compile_context>

<pallas_src>
import jax
import jax.numpy as jnp
from jax.experimental import pallas as pl
from jax.experimental.pallas import tpu as pltpu


def masked_nll_kernel(lp_ref, tgt_ref, mask_ref, out_ref, acc_ref):
    i = pl.program_id(1)                      # row-tile index within this partition
    j = pl.program_id(2)                      # vocab-tile index (innermost)
    tn, tv = lp_ref.shape

    # zero the partition-local accumulator at the start of each partition sweep
    @pl.when(jnp.logical_and(i == 0, j == 0))
    def _():
        acc_ref[...] = jnp.zeros_like(acc_ref)

    lp = lp_ref[...]                          # (tn, tv) in the native dtype (f32/bf16)
    tgt_local = tgt_ref[...] - j * tv         # (tn, 1): target column within this tile
    col = jax.lax.broadcasted_iota(jnp.int32, (tn, tv), 1)   # tile-local column ids
    zero = jnp.zeros((), lp.dtype)
    # gather(logprob, -1, tgt) restricted to this vocab tile: at most one nonzero/row.
    # Out-of-range / negative targets silently contribute 0 (PyTorch gather would
    # raise); padded rows must carry mask=0 and an in-range target.
    sel = jnp.where(col == tgt_local, lp, zero)

    if tv % 128 == 0:
        # Fold the vocab axis into (tn, 128) with lane-aligned VPU adds, staying in
        # the input dtype (exact: at most one nonzero addend per lane position).
        folded = sel[:, 0:128]
        for g in range(1, tv // 128):
            folded = folded + sel[:, g * 128:(g + 1) * 128]
        folded = folded.astype(jnp.float32)
    else:
        # Rare fallback (tv == V and V not a multiple of 128): single lane reduce.
        s = jnp.sum(sel, axis=-1, keepdims=True).astype(jnp.float32)   # (tn, 1)
        lane = jax.lax.broadcasted_iota(jnp.int32, (tn, 128), 1)
        folded = jnp.where(lane == 0, s, 0.0)

    # Mask AFTER the reduction (only tn/8 vregs) and with a select, not a multiply,
    # so a -inf target log-prob on a masked-out row cannot poison the loss with NaN.
    acc_ref[...] += jnp.where(mask_ref[...] > 0, folded, 0.0)

    # finalize: one full reduction per partition, outside the hot loop
    @pl.when(jnp.logical_and(i == pl.num_programs(1) - 1,
                             j == pl.num_programs(2) - 1))
    def _():
        out_ref[...] = jnp.sum(acc_ref[...]).reshape(1, 1, 1)


def _pick_tile(dim, requested, align):
    """Largest t <= requested with dim % t == 0 and (t % align == 0 or t == dim)."""
    t = max(1, min(requested, dim))
    if dim % t == 0 and (t % align == 0 or t == dim):
        return t
    for cand in range(t - (t % align), 0, -align):
        if dim % cand == 0:
            return cand
    return dim   # the full axis is always a legal block


def masked_nll_loss(logprob, tgt, mask, *, tn=256, tv=8192, parts=None):
    """logprob: (N, V) float (f32 or bf16); tgt: (N, 1) int; mask: (N, 1) bool/0-1."""
    N, V = logprob.shape
    itemsize = jnp.dtype(logprob.dtype).itemsize

    # ---- tile selection --------------------------------------------------------
    tv = _pick_tile(V, min(tv, V), 128)
    # keep one logprob buffer <= ~12 MiB so double-buffering + scratch fits the
    # 48 MiB cap below on every generation (v7x has only 64 MiB physical VMEM).
    max_rows = max(8, (12 * 1024 * 1024) // (tv * itemsize) // 8 * 8)
    tn = _pick_tile(N, min(tn, max_rows, N), 8)

    n_row_blocks = N // tn
    if parts is None:
        # v7x has two TensorCores per chip: give each half the rows. Single-TC chips
        # (v5e/v6e) get parts=1 so there is no redundant zero-init/finalize sweep.
        try:
            kind = jax.devices()[0].device_kind.lower()
        except Exception:
            kind = ""
        parts = 2 if "v7" in kind else 1
    P = parts if (parts >= 1 and n_row_blocks % parts == 0) else 1
    R = n_row_blocks // P                      # row tiles per partition
    C = V // tv                                # vocab tiles

    tgt_i = tgt.astype(jnp.int32)
    mask_i = mask.astype(jnp.int32)

    # ---- VMEM budget: true footprint, no double counting ------------------------
    lp_buf = 2 * tn * tv * itemsize            # double-buffered logprob tile
    side_buf = 2 * 2 * tn * 128 * 4            # tgt + mask (lane-padded), 2x buffered
    acc_buf = tn * 128 * 4                     # (tn, 128) f32 accumulator scratch
    out_buf = 2 * 8 * 128 * 4                  # tiny partial-sum output block
    footprint = lp_buf + side_buf + acc_buf + out_buf
    vmem_limit = int(min(48 * 1024 * 1024,                 # headroom on v7x (64 MiB)
                         max(16 * 1024 * 1024, footprint + (2 << 20))))

    partials = pl.pallas_call(
        masked_nll_kernel,
        out_shape=jax.ShapeDtypeStruct((P, 1, 1), jnp.float32),
        grid_spec=pltpu.PrefetchScalarGridSpec(
            num_scalar_prefetch=0,
            grid=(P, R, C),
            in_specs=[
                # vocab axis innermost -> tgt/mask blocks keep the same block index
                # across the whole vocab sweep (no re-DMA per vocab tile).
                pl.BlockSpec((tn, tv), lambda p, i, j: (p * R + i, j)),
                pl.BlockSpec((tn, 1), lambda p, i, j: (p * R + i, 0)),   # tgt indices
                pl.BlockSpec((tn, 1), lambda p, i, j: (p * R + i, 0)),   # mask
            ],
            out_specs=pl.BlockSpec((1, 1, 1), lambda p, i, j: (p, 0, 0)),
            scratch_shapes=[pltpu.VMEM((tn, 128), jnp.float32)],
        ),
        compiler_params=pltpu.CompilerParams(
            dimension_semantics=("parallel", "arbitrary", "arbitrary"),
            vmem_limit_bytes=vmem_limit,
        ),
    )(logprob, tgt_i, mask_i)

    masked_sum = jnp.sum(partials)
    cnt = jnp.sum(mask.astype(jnp.float32))
    # NOTE: cnt == 0 yields inf/nan, matching the PyTorch reference (mean of empty).
    return -(masked_sum / cnt)


def masked_nll_loss_ref(logprob, tgt, mask):
    sel = jnp.take_along_axis(logprob.astype(jnp.float32),
                              tgt.astype(jnp.int32), axis=-1)
    m = mask.astype(jnp.float32)
    sel = jnp.where(mask.astype(bool), sel, 0.0)   # drop, don't multiply (avoid -inf*0)
    return -(jnp.sum(sel) / jnp.sum(m))


if __name__ == "__main__":
    key = jax.random.PRNGKey(0)
    k1, k2, k3 = jax.random.split(key, 3)

    B, T, V = 4, 16, 512          # small: 64 flattened token positions, vocab 512
    N = B * T
    logits = jax.random.normal(k1, (N, V), dtype=jnp.float32)
    logprob = jax.nn.log_softmax(logits, axis=-1)
    tgt = jax.random.randint(k2, (N, 1), 0, V, dtype=jnp.int32)
    mask = jax.random.uniform(k3, (N, 1)) > 0.3
    mask = mask.at[0, 0].set(True)    # guarantee at least one kept element
    mask = mask.at[1, 0].set(False)   # guarantee one dropped row, and make its target
    logprob = logprob.at[1, tgt[1, 0]].set(-jnp.inf)   # log-prob -inf: must not leak NaN

    ref = masked_nll_loss_ref(logprob, tgt, mask)

    # small tiles so the full 3-D grid (parts, row-tiles, vocab-tiles) is exercised
    loss = masked_nll_loss(logprob, tgt, mask, tn=16, tv=256, parts=2)
    jax.block_until_ready(loss)
    assert bool(jnp.isfinite(loss)), loss
    assert jnp.allclose(loss, ref, rtol=1e-5, atol=1e-5), (loss, ref)

    # default (auto) tile / parts selection path
    loss_d = masked_nll_loss(logprob, tgt, mask)
    jax.block_until_ready(loss_d)
    assert jnp.allclose(loss_d, ref, rtol=1e-5, atol=1e-5), (loss_d, ref)

    # odd row count (block == full-dim fallback, no divisibility assert)
    n_odd = 60
    loss_o = masked_nll_loss(logprob[:n_odd], tgt[:n_odd], mask[:n_odd])
    jax.block_until_ready(loss_o)
    ref_o = masked_nll_loss_ref(logprob[:n_odd], tgt[:n_odd], mask[:n_odd])
    assert jnp.allclose(loss_o, ref_o, rtol=1e-5, atol=1e-5), (loss_o, ref_o)

    # bf16 logprob path (halves HBM traffic; compare/select/fold stay in bf16)
    loss_bf16 = masked_nll_loss(logprob.astype(jnp.bfloat16), tgt, mask,
                                tn=16, tv=256, parts=2)
    jax.block_until_ready(loss_bf16)
    assert bool(jnp.isfinite(loss_bf16)), loss_bf16
    assert jnp.allclose(loss_bf16, ref, rtol=1e-2, atol=5e-2), (loss_bf16, ref)

    print("KERNEL_OK")
</pallas_src>

<mosaic_0001>
module attributes {stable_mosaic.version = 11 : i64} {
  func.func @masked_nll_kernel(%arg0: i32, %arg1: i32, %arg2: i32, %arg3: memref<16x256xf32, #tpu.memory_space<vmem>>, %arg4: memref<16x1xi32, #tpu.memory_space<vmem>>, %arg5: memref<16x1xi32, #tpu.memory_space<vmem>>, %arg6: memref<1x1x1xf32, #tpu.memory_space<vmem>>, %arg7: memref<16x128xf32, #tpu.memory_space<vmem>>) attributes {dimension_semantics = [#tpu.dimension_semantics<parallel>, #tpu.dimension_semantics<arbitrary>, #tpu.dimension_semantics<arbitrary>], iteration_bounds = array<i64: 2, 2, 2>, scalar_prefetch = 0 : i64, scratch_operands = 1 : i64, tpu.core_type = #tpu.core_type<tc>, window_params = [{transform_indices = @transform_0, window_bounds = array<i64: 16, 256>}, {transform_indices = @transform_1, window_bounds = array<i64: 16, 1>}, {transform_indices = @transform_2, window_bounds = array<i64: 16, 1>}, {transform_indices = @transform_3, window_bounds = array<i64: 1, 1, 1>}]} {
    %c0_i32 = arith.constant 0 : i32
    %0 = arith.cmpi eq, %arg1, %c0_i32 : i32
    %c0_i32_0 = arith.constant 0 : i32
    %1 = arith.cmpi eq, %arg2, %c0_i32_0 : i32
    %2 = arith.andi %0, %1 : i1
    %3 = arith.extui %2 : i1 to i32
    %c0_i32_1 = arith.constant 0 : i32
    %4 = arith.cmpi ne, %3, %c0_i32_1 : i32
    scf.if %4 {
      %cst_15 = arith.constant 0.000000e+00 : f32
      %33 = vector.broadcast %cst_15 : f32 to vector<16x128xf32>
      %c0_16 = arith.constant 0 : index
      %c0_17 = arith.constant 0 : index
      %34 = vector.load %arg7[%c0_16, %c0_17] : memref<16x128xf32, #tpu.memory_space<vmem>>, vector<16x128xf32>
      tpu.vector_store %arg7[%c0_16, %c0_17], %33 {strides = array<i32>} : memref<16x128xf32, #tpu.memory_space<vmem>>, vector<16x128xf32>,
    } else {
    }
    %c0 = arith.constant 0 : index
    %c0_2 = arith.constant 0 : index
    %5 = vector.load %arg3[%c0, %c0_2] : memref<16x256xf32, #tpu.memory_space<vmem>>, vector<16x256xf32>
    %c0_3 = arith.constant 0 : index
    %c0_4 = arith.constant 0 : index
    %6 = vector.load %arg4[%c0_3, %c0_4] : memref<16x1xi32, #tpu.memory_space<vmem>>, vector<16x1xi32>
    %c256_i32 = arith.constant 256 : i32
    %7 = arith.muli %arg2, %c256_i32 : i32
    %8 = vector.broadcast %7 : i32 to vector<16x1xi32>
    %9 = arith.subi %6, %8 : vector<16x1xi32>
    %10 = tpu.iota {dimensions = array<i32: 1>} : vector<16x256xi32>
    %11 = vector.broadcast %9 : vector<16x1xi32> to vector<16x256xi32>
    %12 = arith.cmpi eq, %10, %11 : vector<16x256xi32>
    %cst = arith.constant 0.000000e+00 : f32
    %13 = vector.broadcast %cst : f32 to vector<16x256xf32>
    %14 = arith.select %12, %5, %13 : vector<16x256xi1>, vector<16x256xf32>
    %15 = vector.extract_strided_slice %14 {offsets = [0, 0], sizes = [16, 128], strides = [1, 1]} : vector<16x256xf32> to vector<16x128xf32>
    %16 = vector.extract_strided_slice %14 {offsets = [0, 128], sizes = [16, 128], strides = [1, 1]} : vector<16x256xf32> to vector<16x128xf32>
    %17 = arith.addf %15, %16 : vector<16x128xf32>
    %c0_5 = arith.constant 0 : index
    %c0_6 = arith.constant 0 : index
    %18 = vector.load %arg7[%c0_5, %c0_6] : memref<16x128xf32, #tpu.memory_space<vmem>>, vector<16x128xf32>
    %c0_7 = arith.constant 0 : index
    %c0_8 = arith.constant 0 : index
    %19 = vector.load %arg5[%c0_7, %c0_8] : memref<16x1xi32, #tpu.memory_space<vmem>>, vector<16x1xi32>
    %c0_i32_9 = arith.constant 0 : i32
    %20 = vector.broadcast %c0_i32_9 : i32 to vector<16x1xi32>
    %21 = arith.cmpi sgt, %19, %20 : vector<16x1xi32>
    %cst_10 = arith.constant 0.000000e+00 : f32
    %22 = vector.shape_cast %21 : vector<16x1xi1> to vector<16x1xi1>
    %23 = vector.broadcast %22 : vector<16x1xi1> to vector<16x128xi1>
    %24 = vector.broadcast %cst_10 : f32 to vector<16x128xf32>
    %25 = arith.select %23, %17, %24 : vector<16x128xi1>, vector<16x128xf32>
    %26 = arith.addf %18, %25 : vector<16x128xf32>
    %c0_11 = arith.constant 0 : index
    %c0_12 = arith.constant 0 : index
    %27 = vector.load %arg7[%c0_11, %c0_12] : memref<16x128xf32, #tpu.memory_space<vmem>>, vector<16x128xf32>
    tpu.vector_store %arg7[%c0_11, %c0_12], %26 {strides = array<i32>} : memref<16x128xf32, #tpu.memory_space<vmem>>, vector<16x128xf32>,
    %c1_i32 = arith.constant 1 : i32
    %28 = arith.cmpi eq, %arg1, %c1_i32 : i32
    %c1_i32_13 = arith.constant 1 : i32
    %29 = arith.cmpi eq, %arg2, %c1_i32_13 : i32
    %30 = arith.andi %28, %29 : i1
    %31 = arith.extui %30 : i1 to i32
    %c0_i32_14 = arith.constant 0 : i32
    %32 = arith.cmpi ne, %31, %c0_i32_14 : i32
    scf.if %32 {
      %c0_15 = arith.constant 0 : index
      %c0_16 = arith.constant 0 : index
      %33 = vector.load %arg7[%c0_15, %c0_16] : memref<16x128xf32, #tpu.memory_space<vmem>>, vector<16x128xf32>
      %34 = vector.shape_cast %33 : vector<16x128xf32> to vector<1x16x128xf32>
      %cst_17 = arith.constant dense<0.000000e+00> : vector<1xf32>
      %35 = vector.multi_reduction <add>, %34, %cst_17 [1, 2] : vector<1x16x128xf32> to vector<1xf32>
      %36 = vector.shape_cast %35 : vector<1xf32> to vector<1x1x1xf32>
      %37 = vector.extract %36[0, 0, 0] : f32 from vector<1x1x1xf32>
      %38 = vector.broadcast %37 : f32 to vector<1x1x1xf32>
      %c0_18 = arith.constant 0 : index
      %c0_19 = arith.constant 0 : index
      %c0_20 = arith.constant 0 : index
      %39 = vector.load %arg6[%c0_18, %c0_19, %c0_20] : memref<1x1x1xf32, #tpu.memory_space<vmem>>, vector<1x1x1xf32>
      tpu.vector_store %arg6[%c0_18, %c0_19, %c0_20], %38 {strides = array<i32>} : memref<1x1x1xf32, #tpu.memory_space<vmem>>, vector<1x1x1xf32>,
    } else {
    }
    return
  }
  func.func @transform_0(%arg0: i32, %arg1: i32, %arg2: i32) -> (i32, i32) {
    %c2_i32 = arith.constant 2 : i32
    %0 = arith.muli %arg0, %c2_i32 : i32
    %1 = arith.addi %0, %arg1 : i32
    %c0_i32 = arith.constant 0 : i32
    return %1, %arg2 : i32, i32
  }
  func.func @transform_1(%arg0: i32, %arg1: i32, %arg2: i32) -> (i32, i32) {
    %c2_i32 = arith.constant 2 : i32
    %0 = arith.muli %arg0, %c2_i32 : i32
    %1 = arith.addi %0, %arg1 : i32
    %c0_i32 = arith.constant 0 : i32
    %c0_i32_0 = arith.constant 0 : i32
    return %1, %c0_i32 : i32, i32
  }
  func.func @transform_2(%arg0: i32, %arg1: i32, %arg2: i32) -> (i32, i32) {
    %c2_i32 = arith.constant 2 : i32
    %0 = arith.muli %arg0, %c2_i32 : i32
    %1 = arith.addi %0, %arg1 : i32
    %c0_i32 = arith.constant 0 : i32
    %c0_i32_0 = arith.constant 0 : i32
    return %1, %c0_i32 : i32, i32
  }
  func.func @transform_3(%arg0: i32, %arg1: i32, %arg2: i32) -> (i32, i32, i32) {
    %c0_i32 = arith.constant 0 : i32
    %c0_i32_0 = arith.constant 0 : i32
    %c0_i32_1 = arith.constant 0 : i32
    return %arg0, %c0_i32, %c0_i32_0 : i32, i32, i32
  }
}

</mosaic_0001>

<llo_original>
// kernel: tpu_custom_call.1
$region0: #{tpu_custom_call.1}
  #allocation0 [shape = 'u32[]', space=smem, size = 0x4, offset = 0x4, fixed_abs, tag = 'smem constant byte address 0x4 - core index']
  #allocation1 [shape = 'u32[144,128]{1,0:T(1,128)}', space=vmem, size = 0x12000, scoped, tag = 'internal scratch']
  #allocation2 [shape = 'f32[16,128]{1,0:T(8,128)}', space=vmem, size = 0x2000, scoped, tag = 'scratch operand']
  %s0 = inlined_call_operand.hbm [shape: f32[64,512], index: 0, kind: input, shape index: {}]
  %s1 = inlined_call_operand.vmem [shape: s32[64,1], index: 1, kind: input, shape index: {}]
  %s2 = inlined_call_operand.vmem [shape: s32[64,1], index: 2, kind: input, shape index: {}]
  %s3 = inlined_call_operand.vmem [shape: f32[2,1,1], index: 3, kind: output, shape index: {}]
  %s4 = sld [smem:[#allocation0]]
  $region57: #{tpu_custom_call.1} parent=0
    _
  %s6 = ssub.s32 1, %s4
  %s7 = scalar_select 0, %s6, %s4
  $region1: #{tpu_custom_call.1} parent=0
    #allocation3 [shape = 'u8[32768]{0}', space=vmem, size = 0x8000, scoped, tag = 'input window, operand 0']
    #allocation4 [shape = 's32[2]{0}', space=sflag, size = 0x8, scoped, tag = 'scoped memory for tpu_custom_call.1']
    %8 = vsyncpa [#allocation4], 0
    %s9 = scalar_lea.sflag [#allocation4], 1
    %10 = vsyncpa %s9, 0
    loop: start=0, step=1, limit=10
    $region2: #{tpu_custom_call.1} parent=1 // loop_pre_header
      _
    $region3: #{tpu_custom_call.1} parent=1 // loop_header
      %s12 = sphi 0, %s16
      %p13 = scmp.ge.s32.totalorder %s12, 10
      %s19 = sphi 0, %s38
      %s20 = sphi 0, %s34
      %s21 = sphi 0, %s30
      %s22 = sphi 0, %s19
      %s23 = sphi 0, %s20
      %s24 = sphi 0, %s21
      %s25 = sphi 0, %s22
      %s26 = sphi 0, %s23
      %s27 = sphi 0, %s24
      %s47 = sphi 0, %s49
      %s50 = sphi 0, %s47
      %s51 = sphi 0, %s50
      %s67 = sphi 0, %s51
      %s77 = sphi 0, %s79
      %s80 = sphi 0, %s77
      %s81 = sphi 0, %s80
      %s97 = sphi 0, %s81
      %s107 = sphi 0, %s109
      %s110 = sphi 0, %s107
      %s111 = sphi 0, %s110
      %s127 = sphi 0, %s111
      %s133 = sphi 0, %s135
      %s136 = sphi 0, %s133
      %s137 = sphi 0, %s136
      %s153 = sphi 0, %s137
    $region4: #{tpu_custom_call.1} parent=1 // loop_header_branch
      %15 = sbr.rel (%p13) target = $region8
    $region5: #{tpu_custom_call.1} parent=1 // loop_body
      %s17 = ssub.s32 %s12, 1
      %s18 = ssub.s32 %s12, 2
      %s28 = sadd.s32 1, %s21
      %p29 = scmp.ge.s32.totalorder %s28, 2
      %s30 = scalar_select %p29, 0, %s28
      %s31 = sadd.s32 1, %s20
      %s32 = scalar_select %p29, %s31, %s20
      %p33 = scmp.ge.s32.totalorder %s32, 2
      %s34 = scalar_select %p33, 0, %s32
      %s35 = sadd.s32 1, %s19
      %s36 = scalar_select %p33, %s35, %s19
      %p37 = scmp.ge.s32.totalorder %s36, 2
      %s38 = scalar_select %p37, 0, %s36
      %s39 = smul.u32 %s19, 2
      %s40 = sadd.s32 %s39, %s20
      %s41 = smul.u32 %s38, 2
      %s42 = sadd.s32 %s41, %s34
      %s43 = ssub.s32 %s40, %s42
      %s44 = ssub.s32 %s21, %s30
      %s45 = sor.u32 %s43, %s44
      %p46 = scmp.eq.s32.totalorder %s45, 0
      %s48 = sadd.s32 %s47, 1
      %s49 = scalar_select %p46, %s47, %s48
      %p52 = pneg %p46
      %p53 = scmp.eq.s32.totalorder %s12, 7
      %p54 = por %p52, %p53
      %p55 = scmp.ne.s32.totalorder %s47, %s50
      %p56 = scmp.eq.s32.totalorder %s12, 0
      %p57 = por %p55, %p56
      %p58 = scmp.ne.s32.totalorder %s47, %s50
      %p59 = scmp.eq.s32.totalorder %s17, 7
      %p60 = por %p58, %p59
      %p61 = scmp.ne.s32.totalorder %s50, %s51
      %p62 = scmp.eq.s32.totalorder %s17, 0
      %p63 = por %p61, %p62
      %p64 = scmp.ne.s32.totalorder %s50, %s51
      %p65 = scmp.eq.s32.totalorder %s18, 7
      %p66 = por %p64, %p65
      %p68 = scmp.ne.s32.totalorder %s51, %s67
      %p69 = scmp.eq.s32.totalorder %s18, 0
      %p70 = por %p68, %p69
      %s71 = smul.u32 %s19, 2
      %s72 = sadd.s32 %s71, %s20
      %s73 = smul.u32 %s38, 2
      %s74 = sadd.s32 %s73, %s34
      %s75 = ssub.s32 %s72, %s74
      %p76 = scmp.eq.s32.totalorder %s75, 0
      %s78 = sadd.s32 %s77, 1
      %s79 = scalar_select %p76, %s77, %s78
      %p82 = pneg %p76
      %p83 = scmp.eq.s32.totalorder %s12, 7
      %p84 = por %p82, %p83
      %p85 = scmp.ne.s32.totalorder %s77, %s80
      %p86 = scmp.eq.s32.totalorder %s12, 0
      %p87 = por %p85, %p86
      %p88 = scmp.ne.s32.totalorder %s77, %s80
      %p89 = scmp.eq.s32.totalorder %s17, 7
      %p90 = por %p88, %p89
      %p91 = scmp.ne.s32.totalorder %s80, %s81
      %p92 = scmp.eq.s32.totalorder %s17, 0
      %p93 = por %p91, %p92
      %p94 = scmp.ne.s32.totalorder %s80, %s81
      %p95 = scmp.eq.s32.totalorder %s18, 7
      %p96 = por %p94, %p95
      %p98 = scmp.ne.s32.totalorder %s81, %s97
      %p99 = scmp.eq.s32.totalorder %s18, 0
      %p100 = por %p98, %p99
      %s101 = smul.u32 %s19, 2
      %s102 = sadd.s32 %s101, %s20
      %s103 = smul.u32 %s38, 2
      %s104 = sadd.s32 %s103, %s34
      %s105 = ssub.s32 %s102, %s104
      %p106 = scmp.eq.s32.totalorder %s105, 0
      %s108 = sadd.s32 %s107, 1
      %s109 = scalar_select %p106, %s107, %s108
      %p112 = pneg %p106
      %p113 = scmp.eq.s32.totalorder %s12, 7
      %p114 = por %p112, %p113
      %p115 = scmp.ne.s32.totalorder %s107, %s110
      %p116 = scmp.eq.s32.totalorder %s12, 0
      %p117 = por %p115, %p116
      %p118 = scmp.ne.s32.totalorder %s107, %s110
      %p119 = scmp.eq.s32.totalorder %s17, 7
      %p120 = por %p118, %p119
      %p121 = scmp.ne.s32.totalorder %s110, %s111
      %p122 = scmp.eq.s32.totalorder %s17, 0
      %p123 = por %p121, %p122
      %p124 = scmp.ne.s32.totalorder %s110, %s111
      %p125 = scmp.eq.s32.totalorder %s18, 7
      %p126 = por %p124, %p125
      %p128 = scmp.ne.s32.totalorder %s111, %s127
      %p129 = scmp.eq.s32.totalorder %s18, 0
      %p130 = por %p128, %p129
      %s131 = ssub.s32 %s19, %s38
      %p132 = scmp.eq.s32.totalorder %s131, 0
      %s134 = sadd.s32 %s133, 1
      %s135 = scalar_select %p132, %s133, %s134
      %p138 = pneg %p132
      %p139 = scmp.eq.s32.totalorder %s12, 7
      %p140 = por %p138, %p139
      %p141 = scmp.ne.s32.totalorder %s133, %s136
      %p142 = scmp.eq.s32.totalorder %s12, 0
      %p143 = por %p141, %p142
      %p144 = scmp.ne.s32.totalorder %s133, %s136
      %p145 = scmp.eq.s32.totalorder %s17, 7
      %p146 = por %p144, %p145
      %p147 = scmp.ne.s32.totalorder %s136, %s137
      %p148 = scmp.eq.s32.totalorder %s17, 0
      %p149 = por %p147, %p148
      %p150 = scmp.ne.s32.totalorder %s136, %s137
      %p151 = scmp.eq.s32.totalorder %s18, 7
      %p152 = por %p150, %p151
      %p154 = scmp.ne.s32.totalorder %s137, %s153
      %p155 = scmp.eq.s32.totalorder %s18, 0
      %p156 = por %p154, %p155
      %p157 = scmp.le.s32.totalorder 1, %s12
      %p158 = scmp.lt.s32.totalorder %s12, 9
      %p159 = pnand %p157, %p158
      %p160 = pneg %p159
      // Predicated region
      $region9: #{tpu_custom_call.1} parent=5 // pred_check
        _
      $region10: #{tpu_custom_call.1} parent=5 // pred_check_branch
        %162 = sbr.rel (%p159) target = $region12
      $region11: #{tpu_custom_call.1} parent=5 // pred_region
        %s163 = ssub.s32 %s12, 1
      $region12: #{tpu_custom_call.1} parent=5 // pred_fallthru
        _
      %p164 = scmp.lt.s32.totalorder %s12, 8
      // Predicated region
      $region13: #{tpu_custom_call.1} parent=5 // pred_check
        %p165 = pneg %p164
      $region14: #{tpu_custom_call.1} parent=5 // pred_check_branch
        %167 = sbr.rel (%p165) target = $region16
      $region15: #{tpu_custom_call.1} parent=5 // pred_region
        // Predicated region
        $region17: #{tpu_custom_call.1} parent=15 // pred_check
          %p168 = pneg %p57
        $region18: #{tpu_custom_call.1} parent=15 // pred_check_branch
          %170 = sbr.rel (%p168) target = $region20
        $region19: #{tpu_custom_call.1} parent=15 // pred_region
          %s171 = sand.u32 %s47, 1
          %s172 = scalar_lea.sflag [#allocation4], %s171
          %s173 = sand.u32 %s47, 1
          %s174 = smul.addr %s173, 32
          %s175 = scalar_lea.vmem [#allocation3], %s174
          %s176 = smul.u32 %s19, 2
          %s177 = sadd.s32 %s176, %s20
          %s178 = smul.u32 2, %s177
          %s179 = smul.u32 2, %s21
          %s181 = ssub.s32 512, 512
          %182 = vsyncadd %s172, %s181
          %s183 = smul.addr %s178, 4
          %s184 = sadd.s32 %s179, %s183
          %s185 = smul.addr %s184, 128
          %s186 = scalar_lea.hbm %s0, %s185
          %s187 = sshll.u32 %s175, 4
          %s188 = int_to_ptr.vmem [resolvable:$true] %s187
          %193 = dma.hbm_to_vmem [thread:$0]  %s186, 512, %s188, %s172, 512, 256, 16
        $region20: #{tpu_custom_call.1} parent=15 // pred_fallthru
          _
        // Predicated region
        $region21: #{tpu_custom_call.1} parent=15 // pred_check
          %p194 = pneg %p87
        $region22: #{tpu_custom_call.1} parent=15 // pred_check_branch
          %196 = sbr.rel (%p194) target = $region24
        $region23: #{tpu_custom_call.1} parent=15 // pred_region
          %s197 = smul.u32 %s19, 2
          %s198 = sadd.s32 %s197, %s20
          %s199 = smul.u32 2, %s198
          %p200 = scmp.lt.s32.totalorder %s199, 7
          %s201 = scalar_select %p200, %s199, 7
          %s202 = smul.addr %s201, 8
          %s203 = scalar_lea.vmem %s1, %s202
          %s204 = smul.u32 %s19, 2
          %s205 = sadd.s32 %s204, %s20
          %s206 = smul.u32 2, %s205
        $region24: #{tpu_custom_call.1} parent=15 // pred_fallthru
          _
        // Predicated region
        $region25: #{tpu_custom_call.1} parent=15 // pred_check
          %p207 = pneg %p117
        $region26: #{tpu_custom_call.1} parent=15 // pred_check_branch
          %209 = sbr.rel (%p207) target = $region28
        $region27: #{tpu_custom_call.1} parent=15 // pred_region
          %s210 = smul.u32 %s19, 2
          %s211 = sadd.s32 %s210, %s20
          %s212 = smul.u32 2, %s211
          %p213 = scmp.lt.s32.totalorder %s212, 7
          %s214 = scalar_select %p213, %s212, 7
          %s215 = smul.addr %s214, 8
          %s216 = scalar_lea.vmem %s2, %s215
          %s217 = smul.u32 %s19, 2
          %s218 = sadd.s32 %s217, %s20
          %s219 = smul.u32 2, %s218
        $region28: #{tpu_custom_call.1} parent=15 // pred_fallthru
          _
      $region16: #{tpu_custom_call.1} parent=5 // pred_fallthru
        _
      %p220 = scmp.le.s32.totalorder 1, %s12
      %p221 = scmp.lt.s32.totalorder %s12, 9
      %p222 = pnand %p220, %p221
      %p223 = pneg %p222
      // Predicated region
      $region29: #{tpu_custom_call.1} parent=5 // pred_check
        _
      $region30: #{tpu_custom_call.1} parent=5 // pred_check_branch
        %225 = sbr.rel (%p222) target = $region32
      $region31: #{tpu_custom_call.1} parent=5 // pred_region
        %s226 = ssub.s32 %s12, 1
        %s227 = sand.u32 %s50, 1
        %s228 = scalar_lea.sflag [#allocation4], %s227
        %s229 = sand.u32 %s50, 1
        %s230 = smul.addr %s229, 32
        %s231 = scalar_lea.vmem [#allocation3], %s230
        // Predicated region
        $region33: #{tpu_custom_call.1} parent=31 // pred_check
          %p232 = pneg %p63
        $region34: #{tpu_custom_call.1} parent=31 // pred_check_branch
          %234 = sbr.rel (%p232) target = $region36
        $region35: #{tpu_custom_call.1} parent=31 // pred_region
          %235 = dma.done %s228, 512
        $region36: #{tpu_custom_call.1} parent=31 // pred_fallthru
          _
        %s236 = sand.u32 %s50, 1
        %s237 = scalar_lea.sflag [#allocation4], %s236
        %s238 = sand.u32 %s50, 1
        %s239 = smul.addr %s238, 32
        %s240 = scalar_lea.vmem [#allocation3], %s239
        %p241 = pneg %p63
        %p242 = pneg %p60
        %s243 = smul.u32 %s22, 2
        %s244 = sadd.s32 %s243, %s23
        %s245 = smul.u32 2, %s244
        %p246 = scmp.lt.s32.totalorder %s245, 7
        %s247 = scalar_select %p246, %s245, 7
        %s248 = smul.addr %s247, 8
        %s249 = scalar_lea.vmem %s1, %s248
        %p250 = pneg %p93
        %p251 = pneg %p90
        %s252 = smul.u32 %s22, 2
        %s253 = sadd.s32 %s252, %s23
        %s254 = smul.u32 2, %s253
        %p255 = scmp.lt.s32.totalorder %s254, 7
        %s256 = scalar_select %p255, %s254, 7
        %s257 = smul.addr %s256, 8
        %s258 = scalar_lea.vmem %s2, %s257
        %p259 = pneg %p123
        %p260 = pneg %p120
        %p261 = pneg %p149
        %p262 = pneg %p146
        %p263 = scmp.lt.s32.totalorder %s22, 1
        %s264 = scalar_select %p263, %s22, 1
        %s265 = scalar_lea.vmem %s3, %s264
        %s266 = smul.u32 %s22, 2
        %s267 = sadd.s32 %s266, %s23
        %s268 = smul.u32 2, %s267
        %s269 = smul.u32 2, %s24
        %s270 = smul.u32 %s22, 2
        %s271 = sadd.s32 %s270, %s23
        %s272 = smul.u32 2, %s271
        %p273 = scmp.lt.s32.totalorder %s272, 7
        %s274 = scalar_select %p273, %s272, 7
        %s275 = smul.addr %s274, 8
        %s276 = scalar_lea.vmem %s1, %s275
        %s277 = smul.u32 %s22, 2
        %s278 = sadd.s32 %s277, %s23
        %s279 = smul.u32 2, %s278
        %s280 = smul.u32 %s22, 2
        %s281 = sadd.s32 %s280, %s23
        %s282 = smul.u32 2, %s281
        %p283 = scmp.lt.s32.totalorder %s282, 7
        %s284 = scalar_select %p283, %s282, 7
        %s285 = smul.addr %s284, 8
        %s286 = scalar_lea.vmem %s2, %s285
        %s287 = smul.u32 %s22, 2
        %s288 = sadd.s32 %s287, %s23
        %s289 = smul.u32 2, %s288
        %p290 = scmp.lt.s32.totalorder %s22, 1
        %s291 = scalar_select %p290, %s22, 1
        %s292 = scalar_lea.vmem %s3, %s291
        %p293 = scmp.eq.s32.totalorder %s23, 0
        %p294 = scmp.eq.s32.totalorder %s24, 0
        %p295 = pnand %p293, %p294
        %p296 = pneg %p295
        // Predicated region
        $region37: #{tpu_custom_call.1} parent=31 // pred_check
          _
        $region38: #{tpu_custom_call.1} parent=31 // pred_check_branch
          %298 = sbr.rel (%p295) target = $region40
        $region39: #{tpu_custom_call.1} parent=31 // pred_region
          %299 = vst [vmem:[#allocation2] sm:$0xff] 0.0
          %300 = vst [vmem:[#allocation2 + $0x8] sm:$0xff] 0.0
        $region40: #{tpu_custom_call.1} parent=31 // pred_fallthru
          _
        %v301 = vld [vmem:[%s231] sm:$0xff]
        %v302 = vld [vmem:[%s231 + $0x8] sm:$0xff]
        %v303 = vld [vmem:[%s231 + $0x10] sm:$0xff]
        %v304 = vld [vmem:[%s231 + $0x18] sm:$0xff]
        %v305 = vld [vmem:[%s276] sm:$0xff]
        %v306 = vld [vmem:[%s276 + $0x8] sm:$0xff]
        %s307 = smul.u32 %s24, 256
        %v308 = vstv %s307
        %v309 = vsub.s32 %v305, %v308
        %v310 = vsub.s32 %v306, %v308
        %v311 = vlaneseq
        %v312 = vand.u32 %v311, 127
        %v313 = vadd.s32 %v312, 128
        %314 = vset.pattern.permute.xlu0 0
        %315 = vperm.xlu0 %314, %v309
        %v316 = vpop.permute.xlu0 %315
        %317 = vset.pattern.permute.xlu0 0
        %318 = vperm.xlu0 %317, %v310
        %v319 = vpop.permute.xlu0 %318
        %vm320 = vcmp.eq.s32.totalorder %v312, %v316
        %vm321 = vcmp.eq.s32.totalorder %v313, %v316
        %vm322 = vcmp.eq.s32.totalorder %v312, %v319
        %vm323 = vcmp.eq.s32.totalorder %v313, %v319
        %v324 = vsel %vm320, %v301, 0.0
        %v325 = vsel %vm321, %v302, 0.0
        %v326 = vsel %vm322, %v303, 0.0
        %v327 = vsel %vm323, %v304, 0.0
        %v328 = vadd.f32 %v324, %v325
        %v329 = vadd.f32 %v326, %v327
        %v330 = vld [vmem:[#allocation2] sm:$0xff]
        %v331 = vld [vmem:[#allocation2 + $0x8] sm:$0xff]
        %v332 = vld [vmem:[%s286] sm:$0xff]
        %v333 = vld [vmem:[%s286 + $0x8] sm:$0xff]
        %vm334 = vcmp.gt.s32.totalorder %v332, 0
        %vm335 = vcmp.gt.s32.totalorder %v333, 0
        %v336 = vsel %vm334, 1, 0
        %v337 = vsel %vm335, 1, 0
        %338 = vset.pattern.permute.xlu0 0
        %339 = vperm.xlu0 %338, %v336
        %v340 = vpop.permute.xlu0 %339
        %341 = vset.pattern.permute.xlu0 0
        %342 = vperm.xlu0 %341, %v337
        %v343 = vpop.permute.xlu0 %342
        %vm344 = vcmp.eq.s32.totalorder %v340, 1
        %vm345 = vcmp.eq.s32.totalorder %v343, 1
        %v346 = vsel %vm344, %v328, 0.0
        %v347 = vsel %vm345, %v329, 0.0
        %v348 = vadd.f32 %v330, %v346
        %v349 = vadd.f32 %v331, %v347
        %350 = vst [vmem:[#allocation2] sm:$0xff] %v348
        %351 = vst [vmem:[#allocation2 + $0x8] sm:$0xff] %v349
        %p352 = scmp.eq.s32.totalorder %s23, 1
        %p353 = scmp.eq.s32.totalorder %s24, 1
        %p354 = pnand %p352, %p353
        %p355 = pneg %p354
        // Predicated region
        $region41: #{tpu_custom_call.1} parent=31 // pred_check
          _
        $region42: #{tpu_custom_call.1} parent=31 // pred_check_branch
          %357 = sbr.rel (%p354) target = $region44
        $region43: #{tpu_custom_call.1} parent=31 // pred_region
          %v358 = vld [vmem:[#allocation2] sm:$0xff]
          %v359 = vld [vmem:[#allocation2 + $0x8] sm:$0xff]
          %v360 = vadd.f32 %v358, %v359
          %361 = vadd.xlane.f32.xlu0 %v360
          %v362 = vpop.xlane.xlu0 %361
          %v363 = vrot.slane %v362, 4
          %v364 = vadd.f32 %v362, %v363
          %v365 = vrot.slane %v364, 2
          %v366 = vadd.f32 %v364, %v365
          %v367 = vrot.slane %v366, 1
          %v368 = vadd.f32 %v366, %v367
          %s369 = vtos %v368
          %v370 = vstv %s369
          %vm371 = vcmask 0
          %372 = vst.msk [vmem:[%s292] sm:$0x1] %vm371, %v370
        $region44: #{tpu_custom_call.1} parent=31 // pred_fallthru
          _
        %p373 = scmp.lt.s32.totalorder %s22, 1
        %s374 = scalar_select %p373, %s22, 1
        %s375 = scalar_lea.vmem %s3, %s374
        // Predicated region
        $region45: #{tpu_custom_call.1} parent=31 // pred_check
          %p376 = pneg %p146
        $region46: #{tpu_custom_call.1} parent=31 // pred_check_branch
          %378 = sbr.rel (%p376) target = $region48
        $region47: #{tpu_custom_call.1} parent=31 // pred_region
          _
        $region48: #{tpu_custom_call.1} parent=31 // pred_fallthru
          _
      $region32: #{tpu_custom_call.1} parent=5 // pred_fallthru
        _
      %p379 = scmp.le.s32.totalorder 2, %s12
      // Predicated region
      $region49: #{tpu_custom_call.1} parent=5 // pred_check
        %p380 = pneg %p379
      $region50: #{tpu_custom_call.1} parent=5 // pred_check_branch
        %382 = sbr.rel (%p380) target = $region52
      $region51: #{tpu_custom_call.1} parent=5 // pred_region
        %s383 = ssub.s32 %s12, 2
        // Predicated region
        $region53: #{tpu_custom_call.1} parent=51 // pred_check
          %p384 = pneg %p152
        $region54: #{tpu_custom_call.1} parent=51 // pred_check_branch
          %386 = sbr.rel (%p384) target = $region56
        $region55: #{tpu_custom_call.1} parent=51 // pred_region
          %p387 = scmp.lt.s32.totalorder %s25, 1
          %s388 = scalar_select %p387, %s25, 1
          %s389 = scalar_lea.vmem %s3, %s388
        $region56: #{tpu_custom_call.1} parent=51 // pred_fallthru
          _
      $region52: #{tpu_custom_call.1} parent=5 // pred_fallthru
        _
    $region6: #{tpu_custom_call.1} parent=1 // loop_footer
      %s16 = sadd.s32 1, %s12
    $region7: #{tpu_custom_call.1} parent=1 // loop_footer_branch
      %11 = sbr.rel target = $region3
    $region8: #{tpu_custom_call.1} parent=1 // loop_exit
      _
    %390 = vsyncpa [#allocation4], 1
    %s391 = scalar_lea.sflag [#allocation4], 1
    %392 = vsyncpa %s391, 1

</llo_original>
